<compile_context>
chip_gen: v5e
topology: v5e:2x2
jax: 0.10.0
libtpu: 0.0.40
codegen_flags: <defaults>
</compile_context>

<pallas_src>
import functools

import jax
import jax.numpy as jnp
from jax.experimental import pallas as pl
from jax.experimental.pallas import tpu as pltpu


_NUM_GROUPS = 5  # alpha, beta, phi, psi, omega


# ---------------------------------------------------------------------------
# Geometry helpers (plain JAX "glue"; semantics of the sam.* angle utilities)
# ---------------------------------------------------------------------------
def _dihedral(p0, p1, p2, p3, eps=1e-9):
    """Standard torsion angle for four points, in radians (-pi, pi]."""
    b0 = p1 - p0
    b1 = p2 - p1
    b2 = p3 - p2
    n1 = jnp.cross(b0, b1)
    n2 = jnp.cross(b1, b2)
    b1n = b1 / (jnp.linalg.norm(b1, axis=-1, keepdims=True) + eps)
    m1 = jnp.cross(n1, b1n)
    x = jnp.sum(n1 * n2, axis=-1)
    y = jnp.sum(m1 * n2, axis=-1)
    return jnp.arctan2(y, x)


def chain_dihedrals(ca):
    """Dihedrals over consecutive CA quadruples. (B, L, 3) -> (B, L-3)."""
    return _dihedral(ca[:, :-3], ca[:, 1:-2], ca[:, 2:-1], ca[:, 3:])


def chain_bond_angles(ca, eps=1e-9):
    """Bond angle at each interior CA. (B, L, 3) -> (B, L-2)."""
    u = ca[:, :-2] - ca[:, 1:-1]
    v = ca[:, 2:] - ca[:, 1:-1]
    cos = jnp.sum(u * v, axis=-1) / (
        jnp.linalg.norm(u, axis=-1) * jnp.linalg.norm(v, axis=-1) + eps)
    return jnp.arccos(jnp.clip(cos, -1.0, 1.0))


def _angle_bin(angle, bins):
    """Bin an angle over [-pi, pi) into `bins` bins."""
    # TODO(synk): angles exactly equal to +pi clip to bins-1; confirm this
    # boundary convention matches the sam.* reference binning.
    idx = jnp.floor((angle + jnp.pi) * (bins / (2.0 * jnp.pi))).astype(jnp.int32)
    return jnp.clip(idx, 0, bins - 1)


def _group_bin_indices(angle, pads, bins, group, sentinel):
    """Flat row-index into the *folded* W1 for one angle group.

    Valid positions map to group*bins + bin; boundary-padded positions map to
    `sentinel`, a guaranteed all-zero row of the folded W1 (so they contribute
    exactly nothing, i.e. mask_class='empty' semantics).
    (B, N) -> (B, N + pads[0] + pads[1]) int32."""
    # TODO(synk): mask_class='extra' (dedicated mask column) not implemented.
    idx = _angle_bin(angle, bins) + group * bins
    return jnp.pad(idx, ((0, 0), pads), constant_values=sentinel)


# ---------------------------------------------------------------------------
# Pallas kernel: one-hot rebuild (VPU) + 3-layer MLP (MXU) on row tiles.
# Inputs: int32 bin indices (tm, 5); weights bf16 resident; f32 accumulation;
# output f32 at the true out_dim width (lane-masked store, but 4x fewer HBM
# bytes than a 128-padded f32 slab and no post-kernel slice pass).
# ---------------------------------------------------------------------------
def _mlp_kernel(idx_ref, w1_ref, b1_ref, w2_ref, b2_ref, w3_ref, b3_ref, o_ref):
    idx = idx_ref[...]                                        # (tm, 5) int32
    tm = idx.shape[0]
    f_pad = w1_ref.shape[0]

    # Rebuild the (tm, f_pad) one-hot in VMEM.  Group lane ranges are disjoint
    # and sentinels land on zero W1 rows, so a logical OR of the 5 per-group
    # hits reproduces the folded one-hot exactly.
    lane = jax.lax.broadcasted_iota(jnp.int32, (tm, f_pad), 1)
    hit = lane == idx[:, 0:1]
    for g in range(1, idx.shape[1]):
        hit = jnp.logical_or(hit, lane == idx[:, g:g + 1])
    onehot = jnp.where(hit, 1.0, 0.0).astype(jnp.bfloat16)    # exact 0/1

    h = jnp.dot(onehot, w1_ref[...], preferred_element_type=jnp.float32)
    h = jnp.maximum(h + b1_ref[...], 0.0)                     # relu
    h = jnp.dot(h.astype(jnp.bfloat16), w2_ref[...],
                preferred_element_type=jnp.float32)
    h = jnp.maximum(h + b2_ref[...], 0.0)                     # relu
    o = jnp.dot(h.astype(jnp.bfloat16), w3_ref[...],
                preferred_element_type=jnp.float32)
    o_ref[...] = (o + b3_ref[...]).astype(o_ref.dtype)


def _round_up(v, m):
    return ((v + m - 1) // m) * m


def _fold_w1(w1, bins, hid, f_pad, h_pad):
    """Fold each group's always-1 validity column into its bin rows:
    contribution of a valid group == W1[bin row] + W1[validity row].
    Rows >= 5*bins stay zero (sentinel rows for padded residues)."""
    w1f = jnp.zeros((f_pad, h_pad), jnp.float32)
    for g in range(_NUM_GROUPS):
        base = g * (bins + 1)
        blk = w1[base:base + bins] + w1[base + bins][None, :]
        w1f = w1f.at[g * bins:(g + 1) * bins, :hid].set(blk)
    return w1f.astype(jnp.bfloat16)


def mlp_pallas(idx2d, params, *, bins, tm=2048):
    """Apply the MLP to an (N, 5) int32 slab of per-residue bin indices."""
    n = idx2d.shape[0]
    w1, b1, w2, b2, w3, b3 = params
    hid = w1.shape[1]
    out_dim = w3.shape[1]
    assert w1.shape[0] == _NUM_GROUPS * (bins + 1), w1.shape

    # Folded W1 has 5*bins live rows + at least one zero sentinel row, padded
    # up to a lane-dense multiple of 128.  Hidden dim padded to 128 too.
    f_pad = _round_up(_NUM_GROUPS * bins + 1, 128)
    h_pad = _round_up(hid, 128)

    w1f = _fold_w1(w1, bins, hid, f_pad, h_pad)
    b1p = jnp.zeros((1, h_pad), jnp.float32).at[:, :hid].set(b1)
    w2p = jnp.zeros((h_pad, h_pad), jnp.bfloat16).at[:hid, :hid].set(
        w2.astype(jnp.bfloat16))
    b2p = jnp.zeros((1, h_pad), jnp.float32).at[:, :hid].set(b2)
    w3p = jnp.zeros((h_pad, out_dim), jnp.bfloat16).at[:hid, :].set(
        w3.astype(jnp.bfloat16))
    b3p = b3.astype(jnp.float32).reshape(1, out_dim)

    # Row tile: 2048 default (amortizes ~0.35us/step overhead, ~4-5 MiB VMEM
    # double-buffered -> safe under v5e's 16 MiB scoped default).  Keep >= 2
    # grid steps for moderate N so ("parallel",) can use both v7x TensorCores.
    tm_eff = min(tm, _round_up(n, 8))
    if n >= 1024:
        tm_eff = min(tm_eff, _round_up(-(-n // 2), 8))
    tm_eff = max(8, tm_eff)
    n_pad = _round_up(n, tm_eff)

    sentinel = _NUM_GROUPS * bins                     # zero row of folded W1
    if n_pad > n:
        idx2d = jnp.pad(idx2d, ((0, n_pad - n), (0, 0)),
                        constant_values=sentinel)

    # TODO(synk): verify in the Mosaic dump that the constant-index weight /
    # bias blocks are fetched once and not re-DMA'd every grid step.
    out = pl.pallas_call(
        _mlp_kernel,
        out_shape=jax.ShapeDtypeStruct((n_pad, out_dim), jnp.float32),
        grid_spec=pltpu.PrefetchScalarGridSpec(
            num_scalar_prefetch=0,
            grid=(n_pad // tm_eff,),
            in_specs=[
                pl.BlockSpec((tm_eff, _NUM_GROUPS), lambda i: (i, 0)),  # idx
                pl.BlockSpec((f_pad, h_pad), lambda i: (0, 0)),   # W1 folded
                pl.BlockSpec((1, h_pad), lambda i: (0, 0)),       # b1
                pl.BlockSpec((h_pad, h_pad), lambda i: (0, 0)),   # W2
                pl.BlockSpec((1, h_pad), lambda i: (0, 0)),       # b2
                pl.BlockSpec((h_pad, out_dim), lambda i: (0, 0)), # W3
                pl.BlockSpec((1, out_dim), lambda i: (0, 0)),     # b3
            ],
            out_specs=pl.BlockSpec((tm_eff, out_dim), lambda i: (i, 0)),
        ),
        compiler_params=pltpu.CompilerParams(
            dimension_semantics=("parallel",)),  # shard rows across v7x TCs
    )(idx2d, w1f, b1p, w2p, b2p, w3p, b3p)
    return out if n_pad == n else out[:n]


# ---------------------------------------------------------------------------
# TemplateNodeEmbedder forward
# ---------------------------------------------------------------------------
def template_node_embedder(x, params, *, mode="aa", angle_bins=16, tm=2048,
                           top=None, epsilon=1e-9):
    """x: (B, L, A>=3, 3).  Returns h_tem: (B, L, node_dim)."""
    B, L = x.shape[0], x.shape[1]
    ca = x[:, :, 1, :]
    sentinel = _NUM_GROUPS * angle_bins

    cols = []
    alpha = chain_dihedrals(ca)                                       # (B, L-3)
    cols.append(_group_bin_indices(alpha, (1, 2), angle_bins, 0, sentinel))
    beta = chain_bond_angles(ca, eps=epsilon)                         # (B, L-2)
    cols.append(_group_bin_indices(beta, (0, 2), angle_bins, 1, sentinel))
    if mode == "aa":
        phi = _dihedral(x[:, :-1, 2], x[:, 1:, 0],
                        x[:, 1:, 1], x[:, 1:, 2], eps=epsilon)        # (B, L-1)
        cols.append(_group_bin_indices(phi, (1, 0), angle_bins, 2, sentinel))
        psi = _dihedral(x[:, :-1, 0], x[:, :-1, 1],
                        x[:, :-1, 2], x[:, 1:, 0], eps=epsilon)       # (B, L-1)
        cols.append(_group_bin_indices(psi, (0, 1), angle_bins, 3, sentinel))
        omega = _dihedral(x[:, :-1, 1], x[:, :-1, 2],
                          x[:, 1:, 0], x[:, 1:, 1], eps=epsilon)      # (B, L-1)
        cols.append(_group_bin_indices(omega, (0, 1), angle_bins, 4, sentinel))
    else:
        # TODO(synk): only mode='aa' is well-defined by the reference
        # (num_feats assumes 5 angle groups); other modes feed zero features
        # for groups 2-4 here instead of erroring.
        cols.extend([jnp.full((B, L), sentinel, jnp.int32)] * 3)

    idx = jnp.stack(cols, axis=-1).reshape(B * L, _NUM_GROUPS)  # (B*L, 5) int32
    h = mlp_pallas(idx, params, bins=angle_bins, tm=tm)
    return h.reshape(B, L, -1)


# ---------------------------------------------------------------------------
# Pure-JAX f32 reference (dense one-hot path) for a tolerance check.
# ---------------------------------------------------------------------------
def _featurize_angle_onehot(angle, pads, bins):
    onehot = jax.nn.one_hot(_angle_bin(angle, bins), bins, dtype=jnp.float32)
    valid = jnp.ones(angle.shape + (1,), jnp.float32)
    feat = jnp.concatenate([onehot, valid], axis=-1)
    return jnp.pad(feat, ((0, 0), pads, (0, 0)))


def _reference_forward(x, params, *, mode="aa", angle_bins=16):
    ca = x[:, :, 1, :]
    feats = [_featurize_angle_onehot(chain_dihedrals(ca), (1, 2), angle_bins),
             _featurize_angle_onehot(chain_bond_angles(ca), (0, 2), angle_bins)]
    if mode == "aa":
        phi = _dihedral(x[:, :-1, 2], x[:, 1:, 0], x[:, 1:, 1], x[:, 1:, 2])
        feats.append(_featurize_angle_onehot(phi, (1, 0), angle_bins))
        psi = _dihedral(x[:, :-1, 0], x[:, :-1, 1], x[:, :-1, 2], x[:, 1:, 0])
        feats.append(_featurize_angle_onehot(psi, (0, 1), angle_bins))
        omega = _dihedral(x[:, :-1, 1], x[:, :-1, 2], x[:, 1:, 0], x[:, 1:, 1])
        feats.append(_featurize_angle_onehot(omega, (0, 1), angle_bins))
    nf = jnp.concatenate(feats, axis=2)
    w1, b1, w2, b2, w3, b3 = params
    h = jnp.maximum(nf @ w1 + b1, 0.0)
    h = jnp.maximum(h @ w2 + b2, 0.0)
    return h @ w3 + b3


# ---------------------------------------------------------------------------
# Deterministic parameter init (PyTorch nn.Linear default: U(-1/sqrt(fan_in), .))
# ---------------------------------------------------------------------------
def init_params(key, num_feats, node_dim, mlp_mult=1):
    hid = node_dim * mlp_mult
    dims = [(num_feats, hid), (hid, hid), (hid, node_dim)]
    params = []
    for d_in, d_out in dims:
        key, kw, kb = jax.random.split(key, 3)
        bound = 1.0 / (d_in ** 0.5)
        w = jax.random.uniform(kw, (d_in, d_out), jnp.float32, -bound, bound)
        b = jax.random.uniform(kb, (1, d_out), jnp.float32, -bound, bound)
        params.extend([w, b])
    return tuple(params)


if __name__ == "__main__":
    B, L, A = 2, 8, 3
    node_dim, angle_bins = 32, 16
    num_feats = (angle_bins + 1) * 5

    key = jax.random.PRNGKey(0)
    kx, kp = jax.random.split(key)
    x = jax.random.normal(kx, (B, L, A, 3), jnp.float32)          # (2, 8, 3, 3)
    params = init_params(kp, num_feats, node_dim)

    fwd = jax.jit(functools.partial(template_node_embedder,
                                    mode="aa", angle_bins=angle_bins))
    h_tem = fwd(x, params)
    jax.block_until_ready(h_tem)
    assert h_tem.shape == (B, L, node_dim), h_tem.shape
    assert bool(jnp.all(jnp.isfinite(h_tem)))

    # bf16-weight kernel vs f32 dense-one-hot reference: tolerance check.
    h_ref = _reference_forward(x, params, mode="aa", angle_bins=angle_bins)
    max_err = float(jnp.max(jnp.abs(h_tem - h_ref)))
    assert max_err < 2e-2, max_err
    print("KERNEL_OK")
</pallas_src>

<mosaic_0001>
module attributes {stable_mosaic.version = 11 : i64} {
  func.func @_mlp_kernel(%arg0: i32, %arg1: memref<16x5xi32, #tpu.memory_space<vmem>>, %arg2: memref<128x128xbf16, #tpu.memory_space<vmem>>, %arg3: memref<1x128xf32, #tpu.memory_space<vmem>>, %arg4: memref<128x128xbf16, #tpu.memory_space<vmem>>, %arg5: memref<1x128xf32, #tpu.memory_space<vmem>>, %arg6: memref<128x32xbf16, #tpu.memory_space<vmem>>, %arg7: memref<1x32xf32, #tpu.memory_space<vmem>>, %arg8: memref<16x32xf32, #tpu.memory_space<vmem>>) attributes {dimension_semantics = [#tpu.dimension_semantics<parallel>], iteration_bounds = array<i64: 1>, scalar_prefetch = 0 : i64, scratch_operands = 0 : i64, tpu.core_type = #tpu.core_type<tc>, window_params = [{transform_indices = @transform_0, window_bounds = array<i64: 16, 5>}, {pipeline_mode = #tpu.pipeline_mode<synchronous>, transform_indices = @transform_1, window_bounds = array<i64: 128, 128>}, {pipeline_mode = #tpu.pipeline_mode<synchronous>, transform_indices = @transform_2, window_bounds = array<i64: 1, 128>}, {pipeline_mode = #tpu.pipeline_mode<synchronous>, transform_indices = @transform_3, window_bounds = array<i64: 128, 128>}, {pipeline_mode = #tpu.pipeline_mode<synchronous>, transform_indices = @transform_4, window_bounds = array<i64: 1, 128>}, {pipeline_mode = #tpu.pipeline_mode<synchronous>, transform_indices = @transform_5, window_bounds = array<i64: 128, 32>}, {pipeline_mode = #tpu.pipeline_mode<synchronous>, transform_indices = @transform_6, window_bounds = array<i64: 1, 32>}, {transform_indices = @transform_7, window_bounds = array<i64: 16, 32>}]} {
    %c0 = arith.constant 0 : index
    %c0_0 = arith.constant 0 : index
    %0 = vector.load %arg1[%c0, %c0_0] : memref<16x5xi32, #tpu.memory_space<vmem>>, vector<16x5xi32>
    %1 = tpu.iota {dimensions = array<i32: 1>} : vector<16x128xi32>
    %2 = vector.extract_strided_slice %0 {offsets = [0, 0], sizes = [16, 1], strides = [1, 1]} : vector<16x5xi32> to vector<16x1xi32>
    %3 = vector.broadcast %2 : vector<16x1xi32> to vector<16x128xi32>
    %4 = arith.cmpi eq, %1, %3 : vector<16x128xi32>
    %5 = vector.extract_strided_slice %0 {offsets = [0, 1], sizes = [16, 1], strides = [1, 1]} : vector<16x5xi32> to vector<16x1xi32>
    %6 = vector.broadcast %5 : vector<16x1xi32> to vector<16x128xi32>
    %7 = arith.cmpi eq, %1, %6 : vector<16x128xi32>
    %8 = arith.ori %4, %7 : vector<16x128xi1>
    %9 = vector.extract_strided_slice %0 {offsets = [0, 2], sizes = [16, 1], strides = [1, 1]} : vector<16x5xi32> to vector<16x1xi32>
    %10 = vector.broadcast %9 : vector<16x1xi32> to vector<16x128xi32>
    %11 = arith.cmpi eq, %1, %10 : vector<16x128xi32>
    %12 = arith.ori %8, %11 : vector<16x128xi1>
    %13 = vector.extract_strided_slice %0 {offsets = [0, 3], sizes = [16, 1], strides = [1, 1]} : vector<16x5xi32> to vector<16x1xi32>
    %14 = vector.broadcast %13 : vector<16x1xi32> to vector<16x128xi32>
    %15 = arith.cmpi eq, %1, %14 : vector<16x128xi32>
    %16 = arith.ori %12, %15 : vector<16x128xi1>
    %17 = vector.extract_strided_slice %0 {offsets = [0, 4], sizes = [16, 1], strides = [1, 1]} : vector<16x5xi32> to vector<16x1xi32>
    %18 = vector.broadcast %17 : vector<16x1xi32> to vector<16x128xi32>
    %19 = arith.cmpi eq, %1, %18 : vector<16x128xi32>
    %20 = arith.ori %16, %19 : vector<16x128xi1>
    %cst = arith.constant 1.000000e+00 : f32
    %cst_1 = arith.constant 0.000000e+00 : f32
    %21 = vector.broadcast %cst : f32 to vector<16x128xf32>
    %22 = vector.broadcast %cst_1 : f32 to vector<16x128xf32>
    %23 = arith.select %20, %21, %22 : vector<16x128xi1>, vector<16x128xf32>
    %24 = arith.truncf %23 : vector<16x128xf32> to vector<16x128xbf16>
    %c0_2 = arith.constant 0 : index
    %c0_3 = arith.constant 0 : index
    %25 = vector.load %arg2[%c0_2, %c0_3] : memref<128x128xbf16, #tpu.memory_space<vmem>>, vector<128x128xbf16>
    %cst_4 = arith.constant dense<0.000000e+00> : vector<16x128xf32>
    %26 = tpu.matmul %24, %25, %cst_4 {dimension_numbers = #tpu.dot_dimension_numbers<[1], [0], [0], [1], [0, 0, 1, 1], [], []>} : vector<16x128xbf16>, vector<128x128xbf16>, vector<16x128xf32> -> vector<16x128xf32>
    %c0_5 = arith.constant 0 : index
    %c0_6 = arith.constant 0 : index
    %27 = vector.load %arg3[%c0_5, %c0_6] : memref<1x128xf32, #tpu.memory_space<vmem>>, vector<1x128xf32>
    %28 = vector.broadcast %27 : vector<1x128xf32> to vector<16x128xf32>
    %29 = arith.addf %26, %28 : vector<16x128xf32>
    %cst_7 = arith.constant 0.000000e+00 : f32
    %30 = vector.broadcast %cst_7 : f32 to vector<16x128xf32>
    %31 = arith.maximumf %29, %30 : vector<16x128xf32>
    %32 = arith.truncf %31 : vector<16x128xf32> to vector<16x128xbf16>
    %c0_8 = arith.constant 0 : index
    %c0_9 = arith.constant 0 : index
    %33 = vector.load %arg4[%c0_8, %c0_9] : memref<128x128xbf16, #tpu.memory_space<vmem>>, vector<128x128xbf16>
    %cst_10 = arith.constant dense<0.000000e+00> : vector<16x128xf32>
    %34 = tpu.matmul %32, %33, %cst_10 {dimension_numbers = #tpu.dot_dimension_numbers<[1], [0], [0], [1], [0, 0, 1, 1], [], []>} : vector<16x128xbf16>, vector<128x128xbf16>, vector<16x128xf32> -> vector<16x128xf32>
    %c0_11 = arith.constant 0 : index
    %c0_12 = arith.constant 0 : index
    %35 = vector.load %arg5[%c0_11, %c0_12] : memref<1x128xf32, #tpu.memory_space<vmem>>, vector<1x128xf32>
    %36 = vector.broadcast %35 : vector<1x128xf32> to vector<16x128xf32>
    %37 = arith.addf %34, %36 : vector<16x128xf32>
    %cst_13 = arith.constant 0.000000e+00 : f32
    %38 = vector.broadcast %cst_13 : f32 to vector<16x128xf32>
    %39 = arith.maximumf %37, %38 : vector<16x128xf32>
    %40 = arith.truncf %39 : vector<16x128xf32> to vector<16x128xbf16>
    %c0_14 = arith.constant 0 : index
    %c0_15 = arith.constant 0 : index
    %41 = vector.load %arg6[%c0_14, %c0_15] : memref<128x32xbf16, #tpu.memory_space<vmem>>, vector<128x32xbf16>
    %cst_16 = arith.constant dense<0.000000e+00> : vector<16x32xf32>
    %42 = tpu.matmul %40, %41, %cst_16 {dimension_numbers = #tpu.dot_dimension_numbers<[1], [0], [0], [1], [0, 0, 1, 1], [], []>} : vector<16x128xbf16>, vector<128x32xbf16>, vector<16x32xf32> -> vector<16x32xf32>
    %c0_17 = arith.constant 0 : index
    %c0_18 = arith.constant 0 : index
    %43 = vector.load %arg7[%c0_17, %c0_18] : memref<1x32xf32, #tpu.memory_space<vmem>>, vector<1x32xf32>
    %44 = vector.broadcast %43 : vector<1x32xf32> to vector<16x32xf32>
    %45 = arith.addf %42, %44 : vector<16x32xf32>
    %c0_19 = arith.constant 0 : index
    %c0_20 = arith.constant 0 : index
    %46 = vector.load %arg8[%c0_19, %c0_20] : memref<16x32xf32, #tpu.memory_space<vmem>>, vector<16x32xf32>
    tpu.vector_store %arg8[%c0_19, %c0_20], %45 {strides = array<i32>} : memref<16x32xf32, #tpu.memory_space<vmem>>, vector<16x32xf32>,
    return
  }
  func.func @transform_0(%arg0: i32) -> (i32, i32) {
    %c0_i32 = arith.constant 0 : i32
    %c0_i32_0 = arith.constant 0 : i32
    return %arg0, %c0_i32 : i32, i32
  }
  func.func @transform_1(%arg0: i32) -> (i32, i32) {
    %c0_i32 = arith.constant 0 : i32
    %c0_i32_0 = arith.constant 0 : i32
    %c0_i32_1 = arith.constant 0 : i32
    return %c0_i32, %c0_i32_0 : i32, i32
  }
  func.func @transform_2(%arg0: i32) -> (i32, i32) {
    %c0_i32 = arith.constant 0 : i32
    %c0_i32_0 = arith.constant 0 : i32
    %c0_i32_1 = arith.constant 0 : i32
    return %c0_i32, %c0_i32_0 : i32, i32
  }
  func.func @transform_3(%arg0: i32) -> (i32, i32) {
    %c0_i32 = arith.constant 0 : i32
    %c0_i32_0 = arith.constant 0 : i32
    %c0_i32_1 = arith.constant 0 : i32
    return %c0_i32, %c0_i32_0 : i32, i32
  }
  func.func @transform_4(%arg0: i32) -> (i32, i32) {
    %c0_i32 = arith.constant 0 : i32
    %c0_i32_0 = arith.constant 0 : i32
    %c0_i32_1 = arith.constant 0 : i32
    return %c0_i32, %c0_i32_0 : i32, i32
  }
  func.func @transform_5(%arg0: i32) -> (i32, i32) {
    %c0_i32 = arith.constant 0 : i32
    %c0_i32_0 = arith.constant 0 : i32
    %c0_i32_1 = arith.constant 0 : i32
    return %c0_i32, %c0_i32_0 : i32, i32
  }
  func.func @transform_6(%arg0: i32) -> (i32, i32) {
    %c0_i32 = arith.constant 0 : i32
    %c0_i32_0 = arith.constant 0 : i32
    %c0_i32_1 = arith.constant 0 : i32
    return %c0_i32, %c0_i32_0 : i32, i32
  }
  func.func @transform_7(%arg0: i32) -> (i32, i32) {
    %c0_i32 = arith.constant 0 : i32
    %c0_i32_0 = arith.constant 0 : i32
    return %arg0, %c0_i32 : i32, i32
  }
}

</mosaic_0001>

<llo_original>
// kernel: template_node_embedder.1
$region0: #{template_node_embedder.1}
  #allocation0 [shape = 'u32[]', space=smem, size = 0x4, offset = 0x4, fixed_abs, tag = 'smem constant byte address 0x4 - core index']
  #allocation1 [shape = 'u32[72,128]{1,0:T(1,128)}', space=vmem, size = 0x9000, scoped, tag = 'internal scratch']
  %s0 = inlined_call_operand.vmem [shape: s32[16,5], index: 0, kind: input, shape index: {}]
  %s1 = inlined_call_operand.vmem [shape: bf16[128,128], index: 1, kind: input, shape index: {}]
  %s2 = inlined_call_operand.vmem [shape: f32[1,128], index: 2, kind: input, shape index: {}]
  %s3 = inlined_call_operand.vmem [shape: bf16[128,128], index: 3, kind: input, shape index: {}]
  %s4 = inlined_call_operand.vmem [shape: f32[1,128], index: 4, kind: input, shape index: {}]
  %s5 = inlined_call_operand.vmem [shape: bf16[128,32], index: 5, kind: input, shape index: {}]
  %s6 = inlined_call_operand.vmem [shape: f32[1,32], index: 6, kind: input, shape index: {}]
  %s7 = inlined_call_operand.hbm [shape: f32[16,32], index: 7, kind: output, shape index: {}]
  %s8 = sld [smem:[#allocation0]]
  $region38: #{template_node_embedder.1} parent=0
    _
  %s10 = ssub.s32 1, %s8
  %s11 = scalar_select 0, %s10, %s8
  $region1: #{template_node_embedder.1} parent=0
    #allocation2 [shape = 'u8[8192]{0}', space=vmem, size = 0x2000, scoped, tag = 'output window, operand 0, single buffered']
    #allocation3 [shape = 's32[1]{0}', space=sflag, size = 0x4, scoped, tag = 'scoped memory for template_node_embedder.1']
    %12 = vsyncpa [#allocation3], 0
    // Predicated region
    $region2: #{template_node_embedder.1} parent=1 // pred_check
      _
    $region3: #{template_node_embedder.1} parent=1 // pred_check_branch
      %14 = sbr.rel (0) target = $region5
    $region4: #{template_node_embedder.1} parent=1 // pred_region
      _
    $region5: #{template_node_embedder.1} parent=1 // pred_fallthru
      _
    // Predicated region
    $region6: #{template_node_embedder.1} parent=1 // pred_check
      _
    $region7: #{template_node_embedder.1} parent=1 // pred_check_branch
      %16 = sbr.rel (0) target = $region9
    $region8: #{template_node_embedder.1} parent=1 // pred_region
      _
    $region9: #{template_node_embedder.1} parent=1 // pred_fallthru
      _
    // Predicated region
    $region10: #{template_node_embedder.1} parent=1 // pred_check
      _
    $region11: #{template_node_embedder.1} parent=1 // pred_check_branch
      %18 = sbr.rel (0) target = $region13
    $region12: #{template_node_embedder.1} parent=1 // pred_region
      _
    $region13: #{template_node_embedder.1} parent=1 // pred_fallthru
      _
    // Predicated region
    $region14: #{template_node_embedder.1} parent=1 // pred_check
      _
    $region15: #{template_node_embedder.1} parent=1 // pred_check_branch
      %20 = sbr.rel (0) target = $region17
    $region16: #{template_node_embedder.1} parent=1 // pred_region
      _
    $region17: #{template_node_embedder.1} parent=1 // pred_fallthru
      _
    // Predicated region
    $region18: #{template_node_embedder.1} parent=1 // pred_check
      _
    $region19: #{template_node_embedder.1} parent=1 // pred_check_branch
      %22 = sbr.rel (0) target = $region21
    $region20: #{template_node_embedder.1} parent=1 // pred_region
      _
    $region21: #{template_node_embedder.1} parent=1 // pred_fallthru
      _
    // Predicated region
    $region22: #{template_node_embedder.1} parent=1 // pred_check
      _
    $region23: #{template_node_embedder.1} parent=1 // pred_check_branch
      %24 = sbr.rel (0) target = $region25
    $region24: #{template_node_embedder.1} parent=1 // pred_region
      _
    $region25: #{template_node_embedder.1} parent=1 // pred_fallthru
      _
    // Predicated region
    $region26: #{template_node_embedder.1} parent=1 // pred_check
      _
    $region27: #{template_node_embedder.1} parent=1 // pred_check_branch
      %26 = sbr.rel (0) target = $region29
    $region28: #{template_node_embedder.1} parent=1 // pred_region
      _
    $region29: #{template_node_embedder.1} parent=1 // pred_fallthru
      _
    %v27 = vld [vmem:[%s0] sm:$0xff]
    %v28 = vld [vmem:[%s0 + $0x8] sm:$0xff]
    %v29 = vlaneseq
    %v30 = vand.u32 %v29, 127
    %31 = vset.pattern.permute.xlu0 0
    %32 = vperm.xlu0 %31, %v27
    %v33 = vpop.permute.xlu0 %32
    %34 = vset.pattern.permute.xlu0 0
    %35 = vperm.xlu0 %34, %v28
    %v36 = vpop.permute.xlu0 %35
    %vm37 = vcmp.eq.s32.totalorder %v30, %v33
    %vm38 = vcmp.eq.s32.totalorder %v30, %v36
    %39 = vset.pattern.permute.xlu0 1
    %40 = vperm.xlu0 %39, %v27
    %v41 = vpop.permute.xlu0 %40
    %42 = vset.pattern.permute.xlu0 1
    %43 = vperm.xlu0 %42, %v28
    %v44 = vpop.permute.xlu0 %43
    %vm45 = vcmp.eq.s32.totalorder %v30, %v41
    %vm46 = vcmp.eq.s32.totalorder %v30, %v44
    %vm47 = vmor %vm37, %vm45
    %vm48 = vmor %vm38, %vm46
    %49 = vset.pattern.permute.xlu0 2
    %50 = vperm.xlu0 %49, %v27
    %v51 = vpop.permute.xlu0 %50
    %52 = vset.pattern.permute.xlu0 2
    %53 = vperm.xlu0 %52, %v28
    %v54 = vpop.permute.xlu0 %53
    %vm55 = vcmp.eq.s32.totalorder %v30, %v51
    %vm56 = vcmp.eq.s32.totalorder %v30, %v54
    %vm57 = vmor %vm47, %vm55
    %vm58 = vmor %vm48, %vm56
    %59 = vset.pattern.permute.xlu0 3
    %60 = vperm.xlu0 %59, %v27
    %v61 = vpop.permute.xlu0 %60
    %62 = vset.pattern.permute.xlu0 3
    %63 = vperm.xlu0 %62, %v28
    %v64 = vpop.permute.xlu0 %63
    %vm65 = vcmp.eq.s32.totalorder %v30, %v61
    %vm66 = vcmp.eq.s32.totalorder %v30, %v64
    %vm67 = vmor %vm57, %vm65
    %vm68 = vmor %vm58, %vm66
    %69 = vset.pattern.permute.xlu0 4
    %70 = vperm.xlu0 %69, %v27
    %v71 = vpop.permute.xlu0 %70
    %72 = vset.pattern.permute.xlu0 4
    %73 = vperm.xlu0 %72, %v28
    %v74 = vpop.permute.xlu0 %73
    %vm75 = vcmp.eq.s32.totalorder %v30, %v71
    %vm76 = vcmp.eq.s32.totalorder %v30, %v74
    %vm77 = vmor %vm67, %vm75
    %vm78 = vmor %vm68, %vm76
    %v79 = vsel %vm77, 1.0, 0.0
    %v80 = vsel %vm78, 1.0, 0.0
    %v81 = vpack.c.bf16 %v80, %v79
    %v82 = vld [vmem:[%s1] sm:$0xf]
    %v83 = vld [vmem:[%s1 + $0x4] sm:$0xf]
    %v84 = vld [vmem:[%s1 + $0x8] sm:$0xf]
    %v85 = vld [vmem:[%s1 + $0xc] sm:$0xf]
    %v86 = vld [vmem:[%s1 + $0x10] sm:$0xf]
    %v87 = vld [vmem:[%s1 + $0x14] sm:$0xf]
    %v88 = vld [vmem:[%s1 + $0x18] sm:$0xf]
    %v89 = vld [vmem:[%s1 + $0x1c] sm:$0xf]
    %v90 = vld [vmem:[%s1 + $0x20] sm:$0xf]
    %v91 = vld [vmem:[%s1 + $0x24] sm:$0xf]
    %v92 = vld [vmem:[%s1 + $0x28] sm:$0xf]
    %v93 = vld [vmem:[%s1 + $0x2c] sm:$0xf]
    %v94 = vld [vmem:[%s1 + $0x30] sm:$0xf]
    %v95 = vld [vmem:[%s1 + $0x34] sm:$0xf]
    %v96 = vld [vmem:[%s1 + $0x38] sm:$0xf]
    %v97 = vld [vmem:[%s1 + $0x3c] sm:$0xf]
    %v98 = vld [vmem:[%s2] sm:$0x1]
    %v100 = vperm.slane %v98, 0
    %v118 = vunpack.c.l.b16 %v82
    %v119 = vunpack.c.l.b16 %v83
    %v120 = vunpack.c.l.b16 %v84
    %v121 = vunpack.c.l.b16 %v85
    %v122 = vunpack.c.l.b16 %v86
    %v123 = vunpack.c.l.b16 %v87
    %v124 = vunpack.c.l.b16 %v88
    %v125 = vunpack.c.l.b16 %v89
    %v126 = vunpack.c.l.b16 %v90
    %v127 = vunpack.c.l.b16 %v91
    %v128 = vunpack.c.l.b16 %v92
    %v129 = vunpack.c.l.b16 %v93
    %v130 = vunpack.c.l.b16 %v94
    %v131 = vunpack.c.l.b16 %v95
    %v132 = vunpack.c.l.b16 %v96
    %v133 = vunpack.c.l.b16 %v97
    %v134 = vpack.c.b16 %v119, %v118
    %v135 = vpack.c.b16 %v121, %v120
    %v136 = vpack.c.b16 %v123, %v122
    %v137 = vpack.c.b16 %v125, %v124
    %v138 = vpack.c.b16 %v127, %v126
    %v139 = vpack.c.b16 %v129, %v128
    %v140 = vpack.c.b16 %v131, %v130
    %v141 = vpack.c.b16 %v133, %v132
    %150 = vmatpush.bf16.msra.mxu0 %v141
    %151 = vmatpush.bf16.msra.mxu0 %v140
    %152 = vmatpush.bf16.msra.mxu0 %v139
    %153 = vmatpush.bf16.msra.mxu0 %v138
    %154 = vmatpush.bf16.msra.mxu0 %v137
    %155 = vmatpush.bf16.msra.mxu0 %v136
    %156 = vmatpush.bf16.msra.mxu0 %v135
    %157 = vmatpush.bf16.msra.mxu0 %v134
    %158 = vmatmul.bf16.gmra.mxu0 %v81
    %v159 = vpop.f32.mrf.mxu0
    %v160 = vadd.f32 %v100, %v159
    %v161 = vpop.f32.mrf.mxu0
    %v162 = vadd.f32 %v100, %v161
    %163 = vdwg.mxu0
    %v164 = vmax.f32 %v160, 0.0
    %v165 = vmax.f32 %v162, 0.0
    %v166 = vpack.c.bf16 %v165, %v164
    %v167 = vld [vmem:[%s3] sm:$0xf]
    %v168 = vld [vmem:[%s3 + $0x4] sm:$0xf]
    %v169 = vld [vmem:[%s3 + $0x8] sm:$0xf]
    %v170 = vld [vmem:[%s3 + $0xc] sm:$0xf]
    %v171 = vld [vmem:[%s3 + $0x10] sm:$0xf]
    %v172 = vld [vmem:[%s3 + $0x14] sm:$0xf]
    %v173 = vld [vmem:[%s3 + $0x18] sm:$0xf]
    %v174 = vld [vmem:[%s3 + $0x1c] sm:$0xf]
    %v175 = vld [vmem:[%s3 + $0x20] sm:$0xf]
    %v176 = vld [vmem:[%s3 + $0x24] sm:$0xf]
    %v177 = vld [vmem:[%s3 + $0x28] sm:$0xf]
    %v178 = vld [vmem:[%s3 + $0x2c] sm:$0xf]
    %v179 = vld [vmem:[%s3 + $0x30] sm:$0xf]
    %v180 = vld [vmem:[%s3 + $0x34] sm:$0xf]
    %v181 = vld [vmem:[%s3 + $0x38] sm:$0xf]
    %v182 = vld [vmem:[%s3 + $0x3c] sm:$0xf]
    %v183 = vld [vmem:[%s4] sm:$0x1]
    %v185 = vperm.slane %v183, 0
    %v203 = vunpack.c.l.b16 %v167
    %v204 = vunpack.c.l.b16 %v168
    %v205 = vunpack.c.l.b16 %v169
    %v206 = vunpack.c.l.b16 %v170
    %v207 = vunpack.c.l.b16 %v171
    %v208 = vunpack.c.l.b16 %v172
    %v209 = vunpack.c.l.b16 %v173
    %v210 = vunpack.c.l.b16 %v174
    %v211 = vunpack.c.l.b16 %v175
    %v212 = vunpack.c.l.b16 %v176
    %v213 = vunpack.c.l.b16 %v177
    %v214 = vunpack.c.l.b16 %v178
    %v215 = vunpack.c.l.b16 %v179
    %v216 = vunpack.c.l.b16 %v180
    %v217 = vunpack.c.l.b16 %v181
    %v218 = vunpack.c.l.b16 %v182
    %v219 = vpack.c.b16 %v204, %v203
    %v220 = vpack.c.b16 %v206, %v205
    %v221 = vpack.c.b16 %v208, %v207
    %v222 = vpack.c.b16 %v210, %v209
    %v223 = vpack.c.b16 %v212, %v211
    %v224 = vpack.c.b16 %v214, %v213
    %v225 = vpack.c.b16 %v216, %v215
    %v226 = vpack.c.b16 %v218, %v217
    %235 = vmatpush.bf16.msra.mxu0 %v226
    %236 = vmatpush.bf16.msra.mxu0 %v225
    %237 = vmatpush.bf16.msra.mxu0 %v224
    %238 = vmatpush.bf16.msra.mxu0 %v223
    %239 = vmatpush.bf16.msra.mxu0 %v222
    %240 = vmatpush.bf16.msra.mxu0 %v221
    %241 = vmatpush.bf16.msra.mxu0 %v220
    %242 = vmatpush.bf16.msra.mxu0 %v219
    %243 = vmatmul.bf16.gmra.mxu0 %v166
    %v244 = vpop.f32.mrf.mxu0
    %v245 = vadd.f32 %v185, %v244
    %v246 = vpop.f32.mrf.mxu0
    %v247 = vadd.f32 %v185, %v246
    %248 = vdwg.mxu0
    %v249 = vmax.f32 %v245, 0.0
    %v250 = vmax.f32 %v247, 0.0
    %v251 = vpack.c.bf16 %v250, %v249
    %v252 = vld [vmem:[%s5] sm:$0xf]
    %v253 = vld [vmem:[%s5 + $0x4] sm:$0xf]
    %v254 = vld [vmem:[%s5 + $0x8] sm:$0xf]
    %v255 = vld [vmem:[%s5 + $0xc] sm:$0xf]
    %v256 = vld [vmem:[%s5 + $0x10] sm:$0xf]
    %v257 = vld [vmem:[%s5 + $0x14] sm:$0xf]
    %v258 = vld [vmem:[%s5 + $0x18] sm:$0xf]
    %v259 = vld [vmem:[%s5 + $0x1c] sm:$0xf]
    %v260 = vld [vmem:[%s5 + $0x20] sm:$0xf]
    %v261 = vld [vmem:[%s5 + $0x24] sm:$0xf]
    %v262 = vld [vmem:[%s5 + $0x28] sm:$0xf]
    %v263 = vld [vmem:[%s5 + $0x2c] sm:$0xf]
    %v264 = vld [vmem:[%s5 + $0x30] sm:$0xf]
    %v265 = vld [vmem:[%s5 + $0x34] sm:$0xf]
    %v266 = vld [vmem:[%s5 + $0x38] sm:$0xf]
    %v267 = vld [vmem:[%s5 + $0x3c] sm:$0xf]
    %v268 = vld [vmem:[%s6] sm:$0x1]
    %v270 = vperm.slane %v268, 0
    %v288 = vunpack.c.l.b16 %v252
    %v289 = vunpack.c.l.b16 %v253
    %v290 = vunpack.c.l.b16 %v254
    %v291 = vunpack.c.l.b16 %v255
    %v292 = vunpack.c.l.b16 %v256
    %v293 = vunpack.c.l.b16 %v257
    %v294 = vunpack.c.l.b16 %v258
    %v295 = vunpack.c.l.b16 %v259
    %v296 = vunpack.c.l.b16 %v260
    %v297 = vunpack.c.l.b16 %v261
    %v298 = vunpack.c.l.b16 %v262
    %v299 = vunpack.c.l.b16 %v263
    %v300 = vunpack.c.l.b16 %v264
    %v301 = vunpack.c.l.b16 %v265
    %v302 = vunpack.c.l.b16 %v266
    %v303 = vunpack.c.l.b16 %v267
    %v304 = vpack.c.b16 %v289, %v288
    %v305 = vpack.c.b16 %v291, %v290
    %v306 = vpack.c.b16 %v293, %v292
    %v307 = vpack.c.b16 %v295, %v294
    %v308 = vpack.c.b16 %v297, %v296
    %v309 = vpack.c.b16 %v299, %v298
    %v310 = vpack.c.b16 %v301, %v300
    %v311 = vpack.c.b16 %v303, %v302
    %320 = vmatpush.bf16.msra.mxu0 %v311
    %321 = vmatpush.bf16.msra.mxu0 %v310
    %322 = vmatpush.bf16.msra.mxu0 %v309
    %323 = vmatpush.bf16.msra.mxu0 %v308
    %324 = vmatpush.bf16.msra.mxu0 %v307
    %325 = vmatpush.bf16.msra.mxu0 %v306
    %326 = vmatpush.bf16.msra.mxu0 %v305
    %327 = vmatpush.bf16.msra.mxu0 %v304
    %328 = vmatmul.bf16.gmra.mxu0 %v251
    %v329 = vpop.f32.mrf.mxu0
    %v330 = vadd.f32 %v270, %v329
    %v331 = vpop.f32.mrf.mxu0
    %v332 = vadd.f32 %v270, %v331
    %333 = vdwg.mxu0
    %vm334 = vcmask 261120
    %335 = vst.msk [vmem:[#allocation2] sm:$0xff] %vm334, %v330
    %336 = vst.msk [vmem:[#allocation2 + $0x8] sm:$0xff] %vm334, %v332
    // Predicated region
    $region30: #{template_node_embedder.1} parent=1 // pred_check
      _
    $region31: #{template_node_embedder.1} parent=1 // pred_check_branch
      %338 = sbr.rel (0) target = $region33
    $region32: #{template_node_embedder.1} parent=1 // pred_region
      %340 = vsyncadd [#allocation3], 0
      %s341 = sshll.u32 [#allocation2], 4
      %s342 = int_to_ptr.vmem [resolvable:$true] %s341
      %s343 = sshll.u32 %s7, 4
      %s344 = int_to_ptr.hbm [resolvable:$true] %s343
      %349 = dma.vmem_to_hbm [thread:$0]  %s342, 256, %s344, [#allocation3], 128, 128, 8
    $region33: #{template_node_embedder.1} parent=1 // pred_fallthru
      _
    // Predicated region
    $region34: #{template_node_embedder.1} parent=1 // pred_check
      _
    $region35: #{template_node_embedder.1} parent=1 // pred_check_branch
      %351 = sbr.rel (0) target = $region37
    $region36: #{template_node_embedder.1} parent=1 // pred_region
      %353 = dma.done [#allocation3], 256
    $region37: #{template_node_embedder.1} parent=1 // pred_fallthru
      _
    %354 = vsyncpa [#allocation3], 1

</llo_original>
